<compile_context>
chip_gen: v7x
topology: tpu7x:2x2x1
jax: 0.10.0
libtpu: 0.0.40
codegen_flags: <defaults>
</compile_context>

<pallas_src>
import functools

import jax
import jax.numpy as jnp
from jax.experimental import pallas as pl
from jax.experimental.pallas import tpu as pltpu

EPS = 1e-5
_LANE = 128


def vn_batchnorm_kernel(x_ref, w_ref, b_ref, o_ref, *, n_valid):
    # x_ref / o_ref: [B, tc, 3*n_pad]  (vector components packed along lanes)
    # w_ref, b_ref : [1, tc, 1] f32
    n_pad = x_ref.shape[-1] // 3
    B = x_ref.shape[0]

    # Per-component f32 loads straight from the ref (never keep the whole
    # native-dtype block live alongside the f32 copies).
    x0 = x_ref[:, :, 0 * n_pad:1 * n_pad].astype(jnp.float32)
    x1 = x_ref[:, :, 1 * n_pad:2 * n_pad].astype(jnp.float32)
    x2 = x_ref[:, :, 2 * n_pad:3 * n_pad].astype(jnp.float32)

    # ---- norm over the vector axis (pure VPU adds, no cross-sublane reduce) --
    sq = x0 * x0 + x1 * x1 + x2 * x2               # [B, tc, n_pad]
    inv_norm = jax.lax.rsqrt(sq)                   # single EUP pass (reused below)
    # norm = sq * rsqrt(sq): one VPU mul instead of a second EUP sqrt.  Guard
    # sq == 0 so exact-zero vectors (and zero lane padding) contribute norm = 0
    # to the statistics, matching sqrt(0) = 0; the per-element output at such
    # positions still becomes NaN via x * inv_norm, like the PyTorch x / 0.
    norm = jnp.where(sq > 0.0, sq * inv_norm, 0.0)

    inv_cnt = 1.0 / float(B * n_valid)

    # ---- BatchNorm1d training-mode statistics (per channel over B, N) --------
    s_lane = jnp.sum(norm, axis=2, keepdims=True)              # [B, tc, 1]
    mean = jnp.sum(s_lane, axis=0, keepdims=True) * inv_cnt     # [1, tc, 1]

    diff = norm - mean                                          # [B, tc, n_pad]
    if n_valid != n_pad:
        # Zero the padded lanes so they do not bias the (biased) variance.
        lane = jax.lax.broadcasted_iota(jnp.int32, diff.shape, 2)
        diff = jnp.where(lane < n_valid, diff, 0.0)
    s2_lane = jnp.sum(diff * diff, axis=2, keepdims=True)       # [B, tc, 1]
    var = jnp.sum(s2_lane, axis=0, keepdims=True) * inv_cnt     # [1, tc, 1]

    inv_std = jax.lax.rsqrt(var + EPS)                          # [1, tc, 1]
    norm_bn = diff * inv_std * w_ref[...] + b_ref[...]          # [B, tc, n_pad]

    # ---- rescale vectors: x * (norm_bn / norm) == x * norm_bn * rsqrt(sq) ----
    scale = norm_bn * inv_norm                                  # [B, tc, n_pad]

    # Three lane-dense slice stores (no concatenate -> no extra [B,tc,3N] slab).
    o_ref[:, :, 0 * n_pad:1 * n_pad] = (x0 * scale).astype(o_ref.dtype)
    o_ref[:, :, 1 * n_pad:2 * n_pad] = (x1 * scale).astype(o_ref.dtype)
    o_ref[:, :, 2 * n_pad:3 * n_pad] = (x2 * scale).astype(o_ref.dtype)


def _vmem_capacity_bytes():
    """Physical VMEM per TensorCore; conservative v7x value if the query fails."""
    try:
        cap = int(pltpu.get_tpu_info().vmem_capacity_bytes)
        if cap > 0:
            return cap
    except Exception:
        pass
    return 64 * 1024 * 1024


def _choose_tc(B, C, n_pad, itemsize, step, vmem_budget_bytes, min_grid=4):
    """Channel-tile size: a multiple of `step` (sublane/packing aligned), sized so
    double-buffered in/out tiles plus ~8 live f32 [B, n_pad] temporaries fit the
    budget, and small enough that the grid has >= min_grid steps (keeps both
    TensorCores busy on v7x and preserves i+1 prefetch)."""
    per_c = 4 * B * 3 * n_pad * itemsize + 8 * B * n_pad * 4
    cap = (vmem_budget_bytes // max(per_c, 1)) // step * step
    cap = max(step, cap)
    c_ceil = ((C + step - 1) // step) * step
    tc = min(cap, c_ceil)
    while tc > step and -(-C // tc) < min_grid:
        tc -= step
    return tc


def vn_batch_norm(x, weight, bias):
    """x: [B, C, 3, N]; weight, bias: [C].  Training-mode VNBatchNorm forward."""
    B, C, V, N = x.shape
    assert V == 3, "vector-neuron features must have a size-3 vector axis"

    itemsize = x.dtype.itemsize
    step = 8 if itemsize >= 4 else (16 if itemsize == 2 else 32)

    # Lane-dense layout: pad N to a multiple of 128 so the component slices and
    # stores start on vreg lane boundaries (unmasked vst).
    n_pad = ((N + _LANE - 1) // _LANE) * _LANE

    vmem_cap = _vmem_capacity_bytes()
    vmem_limit = (vmem_cap * 3) // 4          # headroom for Mosaic internal scratch
    tile_budget = vmem_cap // 3               # double-buffered tiles + f32 temps

    tc = _choose_tc(B, C, n_pad, itemsize, step, tile_budget)
    grid_len = -(-C // tc)
    c_pad = grid_len * tc

    # Wrapper-side zero padding (one XLA pad only for awkward shapes; free when
    # N % 128 == 0 and C % tc == 0).  Padded channels/lanes are statistically
    # independent of the real ones and are sliced off below.
    x_p = x
    if c_pad != C or n_pad != N:
        x_p = jnp.pad(x, ((0, 0), (0, c_pad - C), (0, 0), (0, n_pad - N)))
    x2d = x_p.reshape(B, c_pad, 3 * n_pad)    # free merge of adjacent dims

    w = jnp.pad(weight.astype(jnp.float32), (0, c_pad - C),
                constant_values=1.0).reshape(1, c_pad, 1)
    b = jnp.pad(bias.astype(jnp.float32), (0, c_pad - C)).reshape(1, c_pad, 1)

    elems = B * c_pad * n_pad
    cost = pl.CostEstimate(
        flops=15 * elems,
        transcendentals=1 * elems,            # single rsqrt pass over the slab
        bytes_accessed=2 * x2d.size * x2d.dtype.itemsize + 2 * c_pad * 4,
    )

    kernel = functools.partial(vn_batchnorm_kernel, n_valid=N)

    out2d = pl.pallas_call(
        kernel,
        out_shape=jax.ShapeDtypeStruct((B, c_pad, 3 * n_pad), x.dtype),
        grid_spec=pltpu.PrefetchScalarGridSpec(
            num_scalar_prefetch=0,
            grid=(grid_len,),
            in_specs=[
                pl.BlockSpec((B, tc, 3 * n_pad), lambda i: (0, i, 0)),
                pl.BlockSpec((1, tc, 1), lambda i: (0, i, 0)),
                pl.BlockSpec((1, tc, 1), lambda i: (0, i, 0)),
            ],
            out_specs=pl.BlockSpec((B, tc, 3 * n_pad), lambda i: (0, i, 0)),
        ),
        compiler_params=pltpu.CompilerParams(
            dimension_semantics=("parallel",),   # channel tiles are independent
            vmem_limit_bytes=int(vmem_limit),
        ),
        cost_estimate=cost,
    )(x2d, w, b)

    out = out2d.reshape(B, c_pad, 3, n_pad)
    if c_pad != C or n_pad != N:
        out = out[:, :C, :, :N]
    return out


def vn_batch_norm_ref(x, weight, bias):
    """Pure-JAX reference for correctness checking (training-mode forward)."""
    norm = jnp.sqrt(jnp.sum(x * x, axis=2))                      # [B, C, N]
    mean = jnp.mean(norm, axis=(0, 2), keepdims=True)            # [1, C, 1]
    var = jnp.mean((norm - mean) ** 2, axis=(0, 2), keepdims=True)
    norm_bn = (norm - mean) / jnp.sqrt(var + EPS)
    norm_bn = norm_bn * weight.reshape(1, -1, 1) + bias.reshape(1, -1, 1)
    return x / norm[:, :, None, :] * norm_bn[:, :, None, :]


if __name__ == "__main__":
    key = jax.random.PRNGKey(0)
    k1, k2, k3, k4 = jax.random.split(key, 4)

    # Primary small shape (awkward N, C): exercises the padded-C / padded-N path.
    B, C, V, N = 2, 4, 3, 16
    x = jax.random.normal(k1, (B, C, V, N), dtype=jnp.float32)
    weight = jnp.ones((C,), dtype=jnp.float32)      # BatchNorm1d default init
    bias = jnp.zeros((C,), dtype=jnp.float32)

    out = vn_batch_norm(x, weight, bias)
    jax.block_until_ready(out)
    ref = vn_batch_norm_ref(x, weight, bias)
    assert out.shape == x.shape and out.dtype == x.dtype
    assert jnp.allclose(out, ref, atol=2e-4, rtol=2e-4), "mismatch (padded path)"

    # Secondary shape: lane-dense (N % 128 == 0), non-default affine params.
    B2, C2, N2 = 2, 8, 128
    x2 = jax.random.normal(k2, (B2, C2, V, N2), dtype=jnp.float32)
    w2 = 1.0 + 0.1 * jax.random.normal(k3, (C2,), dtype=jnp.float32)
    b2 = 0.1 * jax.random.normal(k4, (C2,), dtype=jnp.float32)
    out2 = vn_batch_norm(x2, w2, b2)
    jax.block_until_ready(out2)
    ref2 = vn_batch_norm_ref(x2, w2, b2)
    assert jnp.allclose(out2, ref2, atol=2e-4, rtol=2e-4), "mismatch (dense path)"

    print("KERNEL_OK")
</pallas_src>

<mosaic_0001>
module attributes {stable_mosaic.version = 11 : i64} {
  func.func @vn_batchnorm_kernel(%arg0: i32, %arg1: memref<2x8x384xf32, #tpu.memory_space<vmem>>, %arg2: memref<1x8x1xf32, #tpu.memory_space<vmem>>, %arg3: memref<1x8x1xf32, #tpu.memory_space<vmem>>, %arg4: memref<2x8x384xf32, #tpu.memory_space<vmem>>) attributes {dimension_semantics = [#tpu.dimension_semantics<parallel>], iteration_bounds = array<i64: 1>, scalar_prefetch = 0 : i64, scratch_operands = 0 : i64, tpu.core_type = #tpu.core_type<tc>, window_params = [{transform_indices = @transform_0, window_bounds = array<i64: 2, 8, 384>}, {transform_indices = @transform_1, window_bounds = array<i64: 1, 8, 1>}, {transform_indices = @transform_2, window_bounds = array<i64: 1, 8, 1>}, {transform_indices = @transform_3, window_bounds = array<i64: 2, 8, 384>}]} {
    %c0 = arith.constant 0 : index
    %c0_0 = arith.constant 0 : index
    %c0_1 = arith.constant 0 : index
    %0 = vector.load %arg1[%c0, %c0_0, %c0_1] : memref<2x8x384xf32, #tpu.memory_space<vmem>>, vector<2x8x128xf32>
    %c0_2 = arith.constant 0 : index
    %c0_3 = arith.constant 0 : index
    %c128 = arith.constant 128 : index
    %1 = vector.load %arg1[%c0_2, %c0_3, %c128] : memref<2x8x384xf32, #tpu.memory_space<vmem>>, vector<2x8x128xf32>
    %c0_4 = arith.constant 0 : index
    %c0_5 = arith.constant 0 : index
    %c256 = arith.constant 256 : index
    %2 = vector.load %arg1[%c0_4, %c0_5, %c256] : memref<2x8x384xf32, #tpu.memory_space<vmem>>, vector<2x8x128xf32>
    %3 = arith.mulf %0, %0 : vector<2x8x128xf32>
    %4 = arith.mulf %1, %1 : vector<2x8x128xf32>
    %5 = arith.addf %3, %4 : vector<2x8x128xf32>
    %6 = arith.mulf %2, %2 : vector<2x8x128xf32>
    %7 = arith.addf %5, %6 : vector<2x8x128xf32>
    %8 = math.rsqrt %7 : vector<2x8x128xf32>
    %cst = arith.constant 0.000000e+00 : f32
    %9 = vector.broadcast %cst : f32 to vector<2x8x128xf32>
    %10 = arith.cmpf ogt, %7, %9 : vector<2x8x128xf32>
    %11 = arith.mulf %7, %8 : vector<2x8x128xf32>
    %cst_6 = arith.constant 0.000000e+00 : f32
    %12 = vector.broadcast %cst_6 : f32 to vector<2x8x128xf32>
    %13 = arith.select %10, %11, %12 : vector<2x8x128xi1>, vector<2x8x128xf32>
    %cst_7 = arith.constant dense<0.000000e+00> : vector<2x8xf32>
    %14 = vector.multi_reduction <add>, %13, %cst_7 [2] : vector<2x8x128xf32> to vector<2x8xf32>
    %15 = vector.shape_cast %14 : vector<2x8xf32> to vector<2x8x1xf32>
    %cst_8 = arith.constant dense<0.000000e+00> : vector<8x1xf32>
    %16 = vector.multi_reduction <add>, %15, %cst_8 [0] : vector<2x8x1xf32> to vector<8x1xf32>
    %17 = vector.shape_cast %16 : vector<8x1xf32> to vector<1x8x1xf32>
    %cst_9 = arith.constant 3.125000e-02 : f32
    %18 = vector.broadcast %cst_9 : f32 to vector<1x8x1xf32>
    %19 = arith.mulf %17, %18 : vector<1x8x1xf32>
    %20 = vector.broadcast %19 : vector<1x8x1xf32> to vector<2x8x128xf32>
    %21 = arith.subf %13, %20 : vector<2x8x128xf32>
    %22 = tpu.iota {dimensions = array<i32: 2>} : vector<2x8x128xi32>
    %c16_i32 = arith.constant 16 : i32
    %23 = vector.broadcast %c16_i32 : i32 to vector<2x8x128xi32>
    %24 = arith.cmpi slt, %22, %23 : vector<2x8x128xi32>
    %cst_10 = arith.constant 0.000000e+00 : f32
    %25 = vector.broadcast %cst_10 : f32 to vector<2x8x128xf32>
    %26 = arith.select %24, %21, %25 : vector<2x8x128xi1>, vector<2x8x128xf32>
    %27 = arith.mulf %26, %26 : vector<2x8x128xf32>
    %cst_11 = arith.constant dense<0.000000e+00> : vector<2x8xf32>
    %28 = vector.multi_reduction <add>, %27, %cst_11 [2] : vector<2x8x128xf32> to vector<2x8xf32>
    %29 = vector.shape_cast %28 : vector<2x8xf32> to vector<2x8x1xf32>
    %cst_12 = arith.constant dense<0.000000e+00> : vector<8x1xf32>
    %30 = vector.multi_reduction <add>, %29, %cst_12 [0] : vector<2x8x1xf32> to vector<8x1xf32>
    %31 = vector.shape_cast %30 : vector<8x1xf32> to vector<1x8x1xf32>
    %cst_13 = arith.constant 3.125000e-02 : f32
    %32 = vector.broadcast %cst_13 : f32 to vector<1x8x1xf32>
    %33 = arith.mulf %31, %32 : vector<1x8x1xf32>
    %cst_14 = arith.constant 9.99999974E-6 : f32
    %34 = vector.broadcast %cst_14 : f32 to vector<1x8x1xf32>
    %35 = arith.addf %33, %34 : vector<1x8x1xf32>
    %36 = math.rsqrt %35 : vector<1x8x1xf32>
    %37 = vector.broadcast %36 : vector<1x8x1xf32> to vector<2x8x128xf32>
    %38 = arith.mulf %26, %37 : vector<2x8x128xf32>
    %c0_15 = arith.constant 0 : index
    %c0_16 = arith.constant 0 : index
    %c0_17 = arith.constant 0 : index
    %39 = vector.load %arg2[%c0_15, %c0_16, %c0_17] : memref<1x8x1xf32, #tpu.memory_space<vmem>>, vector<1x8x1xf32>
    %40 = vector.broadcast %39 : vector<1x8x1xf32> to vector<2x8x128xf32>
    %41 = arith.mulf %38, %40 : vector<2x8x128xf32>
    %c0_18 = arith.constant 0 : index
    %c0_19 = arith.constant 0 : index
    %c0_20 = arith.constant 0 : index
    %42 = vector.load %arg3[%c0_18, %c0_19, %c0_20] : memref<1x8x1xf32, #tpu.memory_space<vmem>>, vector<1x8x1xf32>
    %43 = vector.broadcast %42 : vector<1x8x1xf32> to vector<2x8x128xf32>
    %44 = arith.addf %41, %43 : vector<2x8x128xf32>
    %45 = arith.mulf %44, %8 : vector<2x8x128xf32>
    %46 = arith.mulf %0, %45 : vector<2x8x128xf32>
    %c0_21 = arith.constant 0 : index
    %c0_22 = arith.constant 0 : index
    %c0_23 = arith.constant 0 : index
    %47 = vector.load %arg4[%c0_21, %c0_22, %c0_23] : memref<2x8x384xf32, #tpu.memory_space<vmem>>, vector<2x8x128xf32>
    tpu.vector_store %arg4[%c0_21, %c0_22, %c0_23], %46 {strides = array<i32>} : memref<2x8x384xf32, #tpu.memory_space<vmem>>, vector<2x8x128xf32>,
    %48 = arith.mulf %1, %45 : vector<2x8x128xf32>
    %c0_24 = arith.constant 0 : index
    %c0_25 = arith.constant 0 : index
    %c128_26 = arith.constant 128 : index
    %49 = vector.load %arg4[%c0_24, %c0_25, %c128_26] : memref<2x8x384xf32, #tpu.memory_space<vmem>>, vector<2x8x128xf32>
    tpu.vector_store %arg4[%c0_24, %c0_25, %c128_26], %48 {strides = array<i32>} : memref<2x8x384xf32, #tpu.memory_space<vmem>>, vector<2x8x128xf32>,
    %50 = arith.mulf %2, %45 : vector<2x8x128xf32>
    %c0_27 = arith.constant 0 : index
    %c0_28 = arith.constant 0 : index
    %c256_29 = arith.constant 256 : index
    %51 = vector.load %arg4[%c0_27, %c0_28, %c256_29] : memref<2x8x384xf32, #tpu.memory_space<vmem>>, vector<2x8x128xf32>
    tpu.vector_store %arg4[%c0_27, %c0_28, %c256_29], %50 {strides = array<i32>} : memref<2x8x384xf32, #tpu.memory_space<vmem>>, vector<2x8x128xf32>,
    return
  }
  func.func @transform_0(%arg0: i32) -> (i32, i32, i32) {
    %c0_i32 = arith.constant 0 : i32
    %c0_i32_0 = arith.constant 0 : i32
    %c0_i32_1 = arith.constant 0 : i32
    return %c0_i32, %arg0, %c0_i32_0 : i32, i32, i32
  }
  func.func @transform_1(%arg0: i32) -> (i32, i32, i32) {
    %c0_i32 = arith.constant 0 : i32
    %c0_i32_0 = arith.constant 0 : i32
    %c0_i32_1 = arith.constant 0 : i32
    return %c0_i32, %arg0, %c0_i32_0 : i32, i32, i32
  }
  func.func @transform_2(%arg0: i32) -> (i32, i32, i32) {
    %c0_i32 = arith.constant 0 : i32
    %c0_i32_0 = arith.constant 0 : i32
    %c0_i32_1 = arith.constant 0 : i32
    return %c0_i32, %arg0, %c0_i32_0 : i32, i32, i32
  }
  func.func @transform_3(%arg0: i32) -> (i32, i32, i32) {
    %c0_i32 = arith.constant 0 : i32
    %c0_i32_0 = arith.constant 0 : i32
    %c0_i32_1 = arith.constant 0 : i32
    return %c0_i32, %arg0, %c0_i32_0 : i32, i32, i32
  }
}

</mosaic_0001>

<llo_original>
// kernel: tpu_custom_call.1
$region0: #{tpu_custom_call.1}
  #allocation0 [shape = 'u32[]', space=smem, size = 0x4, offset = 0x4, fixed_abs, tag = 'smem constant byte address 0x4 - core index']
  #allocation1 [shape = 'u32[144,128]{1,0:T(1,128)}', space=vmem, size = 0x12000, scoped, tag = 'internal scratch']
  %s0 = inlined_call_operand.hbm [shape: f32[2,8,384], index: 0, kind: input, shape index: {}]
  %s1 = inlined_call_operand.vmem [shape: f32[1,8,1], index: 1, kind: input, shape index: {}]
  %s2 = inlined_call_operand.vmem [shape: f32[1,8,1], index: 2, kind: input, shape index: {}]
  %s3 = inlined_call_operand.hbm [shape: f32[2,8,384], index: 3, kind: output, shape index: {}]
  %s4 = sld [smem:[#allocation0]]
  $region26: #{tpu_custom_call.1} parent=0
    _
  %s6 = ssub.s32 1, %s4
  %s7 = scalar_select 0, %s6, %s4
  $region1: #{tpu_custom_call.1} parent=0
    #allocation2 [shape = 'u8[24576]{0}', space=vmem, size = 0x6000, scoped, tag = 'input window, operand 0, single buffered']
    #allocation3 [shape = 's32[1]{0}', space=sflag, size = 0x4, scoped, tag = 'scoped memory for tpu_custom_call.1']
    #allocation4 [shape = 's32[1]{0}', space=sflag, size = 0x4, scoped, tag = 'scoped memory for tpu_custom_call.1']
    #allocation5 [shape = 'u8[24576]{0}', space=vmem, size = 0x6000, scoped, tag = 'output window, operand 0, single buffered']
    %8 = vsyncpa [#allocation3], 0
    %9 = vsyncpa [#allocation4], 0
    // Predicated region
    $region2: #{tpu_custom_call.1} parent=1 // pred_check
      _
    $region3: #{tpu_custom_call.1} parent=1 // pred_check_branch
      %11 = sbr.rel (0) target = $region5
    $region4: #{tpu_custom_call.1} parent=1 // pred_region
      %s13 = ssub.s32 768, 768
      %14 = vsyncadd [#allocation3], %s13
      %s15 = sshll.u32 [#allocation2], 4
      %s16 = int_to_ptr.vmem [resolvable:$true] %s15
      %21 = dma.hbm_to_vmem [thread:$0]  %s0, 768, %s16, [#allocation3], 384, 384, 24
    $region5: #{tpu_custom_call.1} parent=1 // pred_fallthru
      _
    // Predicated region
    $region6: #{tpu_custom_call.1} parent=1 // pred_check
      _
    $region7: #{tpu_custom_call.1} parent=1 // pred_check_branch
      %23 = sbr.rel (0) target = $region9
    $region8: #{tpu_custom_call.1} parent=1 // pred_region
      _
    $region9: #{tpu_custom_call.1} parent=1 // pred_fallthru
      _
    // Predicated region
    $region10: #{tpu_custom_call.1} parent=1 // pred_check
      _
    $region11: #{tpu_custom_call.1} parent=1 // pred_check_branch
      %25 = sbr.rel (0) target = $region13
    $region12: #{tpu_custom_call.1} parent=1 // pred_region
      _
    $region13: #{tpu_custom_call.1} parent=1 // pred_fallthru
      _
    // Predicated region
    $region14: #{tpu_custom_call.1} parent=1 // pred_check
      _
    $region15: #{tpu_custom_call.1} parent=1 // pred_check_branch
      %27 = sbr.rel (0) target = $region17
    $region16: #{tpu_custom_call.1} parent=1 // pred_region
      %28 = dma.done [#allocation3], 768
    $region17: #{tpu_custom_call.1} parent=1 // pred_fallthru
      _
    %v29 = vld [vmem:[#allocation2] sm:$0xff]
    %v30 = vld [vmem:[#allocation2 + $0x18] sm:$0xff]
    %v31 = vld [vmem:[#allocation2 + $0x8] sm:$0xff]
    %v32 = vld [vmem:[#allocation2 + $0x20] sm:$0xff]
    %v33 = vld [vmem:[#allocation2 + $0x10] sm:$0xff]
    %v34 = vld [vmem:[#allocation2 + $0x28] sm:$0xff]
    %v35 = vmul.f32 %v29, %v29
    %v36 = vmul.f32 %v30, %v30
    %v37 = vmul.f32 %v31, %v31
    %v38 = vmul.f32 %v32, %v32
    %v39 = vadd.f32 %v35, %v37
    %v40 = vadd.f32 %v36, %v38
    %v41 = vmul.f32 %v33, %v33
    %v42 = vmul.f32 %v34, %v34
    %v43 = vadd.f32 %v39, %v41
    %v44 = vadd.f32 %v40, %v42
    %v45 = vrsqrt.pop %v43
    %v46 = vrsqrt.pop %v44
    %vm47 = vcmp.gt.f32.partialorder %v43, 0.0
    %vm48 = vcmp.gt.f32.partialorder %v44, 0.0
    %v49 = vmul.f32 %v43, %v45
    %v50 = vmul.f32 %v44, %v46
    %v51 = vsel %vm47, %v49, 0.0
    %v52 = vsel %vm48, %v50, 0.0
    %53 = vadd.xlane.f32.xlu0 %v51
    %v54 = vpop.xlane.xlu0 %53
    %55 = vadd.xlane.f32.xlu0 %v52
    %v56 = vpop.xlane.xlu0 %55
    %v57 = vadd.f32 %v54, %v56
    %v58 = vmul.f32 %v57, 0.03125
    %v59 = vsub.f32 %v51, %v58
    %v60 = vsub.f32 %v52, %v58
    %v61 = vlaneseq
    %v62 = vand.u32 %v61, 127
    %vm63 = vcmp.lt.s32.totalorder %v62, 16
    %v64 = vsel %vm63, %v59, 0.0
    %v65 = vsel %vm63, %v60, 0.0
    %v66 = vmul.f32 %v64, %v64
    %v67 = vmul.f32 %v65, %v65
    %68 = vadd.xlane.f32.xlu0 %v66
    %v69 = vpop.xlane.xlu0 %68
    %70 = vadd.xlane.f32.xlu0 %v67
    %v71 = vpop.xlane.xlu0 %70
    %v72 = vadd.f32 %v69, %v71
    %v73 = vmul.f32 %v72, 0.03125
    %v74 = vadd.f32 %v73, 1e-05
    %v75 = vrsqrt.pop %v74
    %v76 = vmul.f32 %v64, %v75
    %v77 = vmul.f32 %v65, %v75
    %v78 = vld [vmem:[%s1] sm:$0xff]
    %80 = vset.pattern.permute.xlu0 0
    %81 = vperm.xlu0 %80, %v78
    %v82 = vpop.permute.xlu0 %81
    %v84 = vmul.f32 %v76, %v82
    %v85 = vmul.f32 %v77, %v82
    %v86 = vld [vmem:[%s2] sm:$0xff]
    %88 = vset.pattern.permute.xlu0 0
    %89 = vperm.xlu0 %88, %v86
    %v90 = vpop.permute.xlu0 %89
    %v92 = vadd.f32 %v84, %v90
    %v93 = vadd.f32 %v85, %v90
    %v94 = vmul.f32 %v92, %v45
    %v95 = vmul.f32 %v93, %v46
    %v96 = vmul.f32 %v29, %v94
    %v97 = vmul.f32 %v30, %v95
    %98 = vst [vmem:[#allocation5] sm:$0xff] %v96
    %99 = vst [vmem:[#allocation5 + $0x18] sm:$0xff] %v97
    %v100 = vmul.f32 %v31, %v94
    %v101 = vmul.f32 %v32, %v95
    %102 = vst [vmem:[#allocation5 + $0x8] sm:$0xff] %v100
    %103 = vst [vmem:[#allocation5 + $0x20] sm:$0xff] %v101
    %v104 = vmul.f32 %v33, %v94
    %v105 = vmul.f32 %v34, %v95
    %106 = vst [vmem:[#allocation5 + $0x10] sm:$0xff] %v104
    %107 = vst [vmem:[#allocation5 + $0x28] sm:$0xff] %v105
    // Predicated region
    $region18: #{tpu_custom_call.1} parent=1 // pred_check
      _
    $region19: #{tpu_custom_call.1} parent=1 // pred_check_branch
      %109 = sbr.rel (0) target = $region21
    $region20: #{tpu_custom_call.1} parent=1 // pred_region
      %s111 = ssub.s32 768, 768
      %112 = vsyncadd [#allocation4], %s111
      %s113 = sshll.u32 [#allocation5], 4
      %s114 = int_to_ptr.vmem [resolvable:$true] %s113
      %119 = dma.vmem_to_hbm [thread:$0]  %s114, 768, %s3, [#allocation4], 384, 384, 24
    $region21: #{tpu_custom_call.1} parent=1 // pred_fallthru
      _
    // Predicated region
    $region22: #{tpu_custom_call.1} parent=1 // pred_check
      _
    $region23: #{tpu_custom_call.1} parent=1 // pred_check_branch
      %121 = sbr.rel (0) target = $region25
    $region24: #{tpu_custom_call.1} parent=1 // pred_region
      %122 = dma.done [#allocation4], 768
    $region25: #{tpu_custom_call.1} parent=1 // pred_fallthru
      _
    %123 = vsyncpa [#allocation3], 1
    %124 = vsyncpa [#allocation4], 1

</llo_original>
